<compile_context>
chip_gen: v5e
topology: v5e:2x2
jax: 0.10.0
libtpu: 0.0.40
codegen_flags: <defaults>
</compile_context>

<pallas_src>
import functools
import math

import jax
import jax.numpy as jnp
from jax.experimental import pallas as pl
from jax.experimental.pallas import tpu as pltpu


def _round_up(x, m):
    return (x + m - 1) // m * m


# -----------------------------------------------------------------------------
# Kernel 1: embedding gather + sum over the sequence dimension.
#   refs = (words_smem, emb_row_0, ..., emb_row_{S-1}, out)
#   each emb_row_s is a (1, 1, E_pad) f32 block selected by the scalar-prefetch
#   index_map; out is the (1, 1, E_pad) f32 embed_sum row for this batch index.
# -----------------------------------------------------------------------------
def _make_gather_sum_kernel(seq_len):
    def kernel(*refs):
        emb_rows = refs[1:1 + seq_len]
        out_ref = refs[1 + seq_len]
        acc = emb_rows[0][...]
        for s in range(1, seq_len):
            acc = acc + emb_rows[s][...]          # exact f32 adds on the VPU
        out_ref[...] = acc
    return kernel


# -----------------------------------------------------------------------------
# Kernel 2: Linear.  x:(tB, E_pad) @ wT:(E_pad, tC) + b:(1, tC) -> (tB, tC).
# f32 inputs, f32 MXU accumulation.  (Pass precision=HIGHEST in jnp.dot if a
# bit-exact f32 Linear is required; default precision is plenty here.)
# -----------------------------------------------------------------------------
def _linear_kernel(x_ref, wT_ref, b_ref, out_ref):
    out_ref[...] = jnp.dot(x_ref[...], wT_ref[...],
                           preferred_element_type=jnp.float32) + b_ref[...]


def cbow_forward(words, emb, w, b, *, tile_b=None, tile_c=None):
    """words:[S,B] int32, emb:[V,E] f32, w:[C,E] f32, b:[C] f32 -> [B,C] f32."""
    S, B = words.shape
    V, E = emb.shape
    C = w.shape[0]

    # ---- tile choices --------------------------------------------------------
    # Batch tile for the Linear matmul: 256 halves the number of B tiles on
    # v6e/v7x when the batch is large; small batches just pad to a sublane
    # multiple.  (For v7x small-batch inference, tile_b=64 gives >=2 parallel
    # steps so both TensorCores get work -- pass it explicitly if desired.)
    if tile_b is None:
        if B >= 256:
            tile_b = 256
        elif B >= 128:
            tile_b = 128
        else:
            tile_b = _round_up(B, 8)
    B_pad = _round_up(B, tile_b)

    E_pad = _round_up(E, 128)        # lane-dense gather rows / matmul K
    C_pad = _round_up(C, 128)        # lane-dense output stores
    if tile_c is None:
        if C_pad <= 512:
            tile_c = C_pad
        elif C_pad % 512 == 0:
            tile_c = 512
        elif C_pad % 256 == 0:
            tile_c = 256
        else:
            tile_c = 128
    n_b = B_pad // tile_b
    n_c = C_pad // tile_c

    # ---- host-side layout glue ----------------------------------------------
    # words [S, B] -> flat [B_pad * S] int32 (scalar prefetch -> SMEM).  Padded
    # batch rows use id 0 (always a valid row); their outputs are sliced off.
    words_bs = jnp.zeros((B_pad, S), jnp.int32).at[:B, :].set(
        jnp.transpose(words).astype(jnp.int32))
    words_flat = words_bs.reshape(-1)

    # Embedding table kept in f32 (gather traffic is only B*S*E_pad bytes).
    # The unit middle dim makes every BlockSpec's last two dims equal the
    # array's last two dims, satisfying the (8, 128) block constraint.
    emb_p = jnp.zeros((V, 1, E_pad), jnp.float32).at[:, 0, :E].set(
        emb.astype(jnp.float32))

    wT_p = jnp.zeros((E_pad, C_pad), jnp.float32).at[:E, :C].set(
        jnp.transpose(w).astype(jnp.float32))
    b_p = jnp.zeros((1, C_pad), jnp.float32).at[0, :C].set(
        b.astype(jnp.float32))

    # ---- kernel 1: scalar-prefetch gather + seq sum --------------------------
    def emb_index_map(bi, words_ref, *, s):
        # Dynamic block index from the prefetched word ids (block size 1 along
        # the vocab dim, so block index == row index).
        return (words_ref[bi * S + s], 0, 0)

    gather_in_specs = [
        pl.BlockSpec((1, 1, E_pad), functools.partial(emb_index_map, s=s))
        for s in range(S)
    ]

    embed_sum = pl.pallas_call(
        _make_gather_sum_kernel(S),
        out_shape=jax.ShapeDtypeStruct((B_pad, 1, E_pad), jnp.float32),
        grid_spec=pltpu.PrefetchScalarGridSpec(
            num_scalar_prefetch=1,
            grid=(B_pad,),
            in_specs=gather_in_specs,
            out_specs=pl.BlockSpec((1, 1, E_pad),
                                   lambda bi, words_ref: (bi, 0, 0)),
        ),
        compiler_params=pltpu.CompilerParams(
            dimension_semantics=("parallel",)),
    )(words_flat, *([emb_p] * S))

    embed_sum = embed_sum.reshape(B_pad, E_pad)

    # ---- kernel 2: tiled Linear (C axis tiled for large nclass) --------------
    out = pl.pallas_call(
        _linear_kernel,
        out_shape=jax.ShapeDtypeStruct((B_pad, C_pad), jnp.float32),
        grid=(n_b, n_c),
        in_specs=[
            pl.BlockSpec((tile_b, E_pad), lambda i, j: (i, 0)),   # embed_sum
            pl.BlockSpec((E_pad, tile_c), lambda i, j: (0, j)),   # fc weight^T
            pl.BlockSpec((1, tile_c), lambda i, j: (0, j)),       # fc bias
        ],
        out_specs=pl.BlockSpec((tile_b, tile_c), lambda i, j: (i, j)),
        compiler_params=pltpu.CompilerParams(
            dimension_semantics=("parallel", "parallel")),
    )(embed_sum, wT_p, b_p)

    return out[:B, :C]


def ref_forward(words, emb, w, b):
    we = emb[words]                                   # [S, B, E]
    es = we.sum(axis=0).reshape(-1, emb.shape[1])     # [B, E]
    return es @ w.T + b                               # [B, C]


if __name__ == "__main__":
    V, C, E = 64, 8, 32      # vocabSize, nclass, embed_size
    S, B = 8, 2              # seq length, batch

    key = jax.random.PRNGKey(0)
    k_words, k_emb, k_w, k_b = jax.random.split(key, 4)

    words = jax.random.randint(k_words, (S, B), 0, V, dtype=jnp.int32)

    # nn.init.xavier_uniform_ on the embedding table.
    emb_bound = math.sqrt(6.0 / (V + E))
    emb = jax.random.uniform(k_emb, (V, E), jnp.float32, -emb_bound, emb_bound)

    # NOTE: the original module zeroes fc.weight via nn.init.constant_(..., 0.0);
    # we use a xavier-uniform init here so the fc matmul path is actually
    # exercised instead of producing bias-only outputs.
    w_bound = math.sqrt(6.0 / (E + C))
    w = jax.random.uniform(k_w, (C, E), jnp.float32, -w_bound, w_bound)

    # default nn.Linear bias init: U(-1/sqrt(in_features), 1/sqrt(in_features))
    b_bound = 1.0 / math.sqrt(E)
    b = jax.random.uniform(k_b, (C,), jnp.float32, -b_bound, b_bound)

    fwd = jax.jit(lambda ws, e, wt, bs: cbow_forward(ws, e, wt, bs))
    out = fwd(words, emb, w, b)
    out = jax.block_until_ready(out)

    expected = ref_forward(words, emb, w, b)
    assert out.shape == (B, C), out.shape
    # Gather/sum is exact f32; only the final matmul is subject to default TPU
    # matmul precision (bf16-rounded inputs, f32 accumulate) -> loose-ish tol.
    assert jnp.allclose(out, expected, rtol=2e-2, atol=2e-2), (out, expected)

    print("KERNEL_OK")
</pallas_src>

<mosaic_0001>
module attributes {stable_mosaic.version = 11 : i64} {
  func.func @kernel(%arg0: i32, %arg1: memref<64xi32, #tpu.memory_space<smem>>, %arg2: memref<1x1x128xf32, #tpu.memory_space<vmem>>, %arg3: memref<1x1x128xf32, #tpu.memory_space<vmem>>, %arg4: memref<1x1x128xf32, #tpu.memory_space<vmem>>, %arg5: memref<1x1x128xf32, #tpu.memory_space<vmem>>, %arg6: memref<1x1x128xf32, #tpu.memory_space<vmem>>, %arg7: memref<1x1x128xf32, #tpu.memory_space<vmem>>, %arg8: memref<1x1x128xf32, #tpu.memory_space<vmem>>, %arg9: memref<1x1x128xf32, #tpu.memory_space<vmem>>, %arg10: memref<1x1x128xf32, #tpu.memory_space<vmem>>) attributes {dimension_semantics = [#tpu.dimension_semantics<parallel>], iteration_bounds = array<i64: 8>, scalar_prefetch = 1 : i64, scratch_operands = 0 : i64, tpu.core_type = #tpu.core_type<tc>, window_params = [{transform_indices = @transform_0, window_bounds = array<i64: 1, 1, 128>}, {transform_indices = @transform_1, window_bounds = array<i64: 1, 1, 128>}, {transform_indices = @transform_2, window_bounds = array<i64: 1, 1, 128>}, {transform_indices = @transform_3, window_bounds = array<i64: 1, 1, 128>}, {transform_indices = @transform_4, window_bounds = array<i64: 1, 1, 128>}, {transform_indices = @transform_5, window_bounds = array<i64: 1, 1, 128>}, {transform_indices = @transform_6, window_bounds = array<i64: 1, 1, 128>}, {transform_indices = @transform_7, window_bounds = array<i64: 1, 1, 128>}, {transform_indices = @transform_8, window_bounds = array<i64: 1, 1, 128>}]} {
    %c0 = arith.constant 0 : index
    %c0_0 = arith.constant 0 : index
    %c0_1 = arith.constant 0 : index
    %0 = vector.load %arg2[%c0, %c0_0, %c0_1] : memref<1x1x128xf32, #tpu.memory_space<vmem>>, vector<1x1x128xf32>
    %c0_2 = arith.constant 0 : index
    %c0_3 = arith.constant 0 : index
    %c0_4 = arith.constant 0 : index
    %1 = vector.load %arg3[%c0_2, %c0_3, %c0_4] : memref<1x1x128xf32, #tpu.memory_space<vmem>>, vector<1x1x128xf32>
    %2 = arith.addf %0, %1 : vector<1x1x128xf32>
    %c0_5 = arith.constant 0 : index
    %c0_6 = arith.constant 0 : index
    %c0_7 = arith.constant 0 : index
    %3 = vector.load %arg4[%c0_5, %c0_6, %c0_7] : memref<1x1x128xf32, #tpu.memory_space<vmem>>, vector<1x1x128xf32>
    %4 = arith.addf %2, %3 : vector<1x1x128xf32>
    %c0_8 = arith.constant 0 : index
    %c0_9 = arith.constant 0 : index
    %c0_10 = arith.constant 0 : index
    %5 = vector.load %arg5[%c0_8, %c0_9, %c0_10] : memref<1x1x128xf32, #tpu.memory_space<vmem>>, vector<1x1x128xf32>
    %6 = arith.addf %4, %5 : vector<1x1x128xf32>
    %c0_11 = arith.constant 0 : index
    %c0_12 = arith.constant 0 : index
    %c0_13 = arith.constant 0 : index
    %7 = vector.load %arg6[%c0_11, %c0_12, %c0_13] : memref<1x1x128xf32, #tpu.memory_space<vmem>>, vector<1x1x128xf32>
    %8 = arith.addf %6, %7 : vector<1x1x128xf32>
    %c0_14 = arith.constant 0 : index
    %c0_15 = arith.constant 0 : index
    %c0_16 = arith.constant 0 : index
    %9 = vector.load %arg7[%c0_14, %c0_15, %c0_16] : memref<1x1x128xf32, #tpu.memory_space<vmem>>, vector<1x1x128xf32>
    %10 = arith.addf %8, %9 : vector<1x1x128xf32>
    %c0_17 = arith.constant 0 : index
    %c0_18 = arith.constant 0 : index
    %c0_19 = arith.constant 0 : index
    %11 = vector.load %arg8[%c0_17, %c0_18, %c0_19] : memref<1x1x128xf32, #tpu.memory_space<vmem>>, vector<1x1x128xf32>
    %12 = arith.addf %10, %11 : vector<1x1x128xf32>
    %c0_20 = arith.constant 0 : index
    %c0_21 = arith.constant 0 : index
    %c0_22 = arith.constant 0 : index
    %13 = vector.load %arg9[%c0_20, %c0_21, %c0_22] : memref<1x1x128xf32, #tpu.memory_space<vmem>>, vector<1x1x128xf32>
    %14 = arith.addf %12, %13 : vector<1x1x128xf32>
    %c0_23 = arith.constant 0 : index
    %c0_24 = arith.constant 0 : index
    %c0_25 = arith.constant 0 : index
    %15 = vector.load %arg10[%c0_23, %c0_24, %c0_25] : memref<1x1x128xf32, #tpu.memory_space<vmem>>, vector<1x1x128xf32>
    tpu.vector_store %arg10[%c0_23, %c0_24, %c0_25], %14 {strides = array<i32>} : memref<1x1x128xf32, #tpu.memory_space<vmem>>, vector<1x1x128xf32>,
    return
  }
  func.func @transform_0(%arg0: i32, %arg1: memref<64xi32, #tpu.memory_space<smem>>) -> (i32, i32, i32) {
    %c8_i32 = arith.constant 8 : i32
    %0 = arith.muli %arg0, %c8_i32 : i32
    %c0_i32 = arith.constant 0 : i32
    %1 = arith.addi %0, %c0_i32 : i32
    %2 = arith.index_cast %1 : i32 to index
    %3 = memref.load %arg1[%2] : memref<64xi32, #tpu.memory_space<smem>>
    %c0_i32_0 = arith.constant 0 : i32
    %c0_i32_1 = arith.constant 0 : i32
    %c0_i32_2 = arith.constant 0 : i32
    return %3, %c0_i32_0, %c0_i32_1 : i32, i32, i32
  }
  func.func @transform_1(%arg0: i32, %arg1: memref<64xi32, #tpu.memory_space<smem>>) -> (i32, i32, i32) {
    %c8_i32 = arith.constant 8 : i32
    %0 = arith.muli %arg0, %c8_i32 : i32
    %c1_i32 = arith.constant 1 : i32
    %1 = arith.addi %0, %c1_i32 : i32
    %2 = arith.index_cast %1 : i32 to index
    %3 = memref.load %arg1[%2] : memref<64xi32, #tpu.memory_space<smem>>
    %c0_i32 = arith.constant 0 : i32
    %c0_i32_0 = arith.constant 0 : i32
    %c0_i32_1 = arith.constant 0 : i32
    return %3, %c0_i32, %c0_i32_0 : i32, i32, i32
  }
  func.func @transform_2(%arg0: i32, %arg1: memref<64xi32, #tpu.memory_space<smem>>) -> (i32, i32, i32) {
    %c8_i32 = arith.constant 8 : i32
    %0 = arith.muli %arg0, %c8_i32 : i32
    %c2_i32 = arith.constant 2 : i32
    %1 = arith.addi %0, %c2_i32 : i32
    %2 = arith.index_cast %1 : i32 to index
    %3 = memref.load %arg1[%2] : memref<64xi32, #tpu.memory_space<smem>>
    %c0_i32 = arith.constant 0 : i32
    %c0_i32_0 = arith.constant 0 : i32
    %c0_i32_1 = arith.constant 0 : i32
    return %3, %c0_i32, %c0_i32_0 : i32, i32, i32
  }
  func.func @transform_3(%arg0: i32, %arg1: memref<64xi32, #tpu.memory_space<smem>>) -> (i32, i32, i32) {
    %c8_i32 = arith.constant 8 : i32
    %0 = arith.muli %arg0, %c8_i32 : i32
    %c3_i32 = arith.constant 3 : i32
    %1 = arith.addi %0, %c3_i32 : i32
    %2 = arith.index_cast %1 : i32 to index
    %3 = memref.load %arg1[%2] : memref<64xi32, #tpu.memory_space<smem>>
    %c0_i32 = arith.constant 0 : i32
    %c0_i32_0 = arith.constant 0 : i32
    %c0_i32_1 = arith.constant 0 : i32
    return %3, %c0_i32, %c0_i32_0 : i32, i32, i32
  }
  func.func @transform_4(%arg0: i32, %arg1: memref<64xi32, #tpu.memory_space<smem>>) -> (i32, i32, i32) {
    %c8_i32 = arith.constant 8 : i32
    %0 = arith.muli %arg0, %c8_i32 : i32
    %c4_i32 = arith.constant 4 : i32
    %1 = arith.addi %0, %c4_i32 : i32
    %2 = arith.index_cast %1 : i32 to index
    %3 = memref.load %arg1[%2] : memref<64xi32, #tpu.memory_space<smem>>
    %c0_i32 = arith.constant 0 : i32
    %c0_i32_0 = arith.constant 0 : i32
    %c0_i32_1 = arith.constant 0 : i32
    return %3, %c0_i32, %c0_i32_0 : i32, i32, i32
  }
  func.func @transform_5(%arg0: i32, %arg1: memref<64xi32, #tpu.memory_space<smem>>) -> (i32, i32, i32) {
    %c8_i32 = arith.constant 8 : i32
    %0 = arith.muli %arg0, %c8_i32 : i32
    %c5_i32 = arith.constant 5 : i32
    %1 = arith.addi %0, %c5_i32 : i32
    %2 = arith.index_cast %1 : i32 to index
    %3 = memref.load %arg1[%2] : memref<64xi32, #tpu.memory_space<smem>>
    %c0_i32 = arith.constant 0 : i32
    %c0_i32_0 = arith.constant 0 : i32
    %c0_i32_1 = arith.constant 0 : i32
    return %3, %c0_i32, %c0_i32_0 : i32, i32, i32
  }
  func.func @transform_6(%arg0: i32, %arg1: memref<64xi32, #tpu.memory_space<smem>>) -> (i32, i32, i32) {
    %c8_i32 = arith.constant 8 : i32
    %0 = arith.muli %arg0, %c8_i32 : i32
    %c6_i32 = arith.constant 6 : i32
    %1 = arith.addi %0, %c6_i32 : i32
    %2 = arith.index_cast %1 : i32 to index
    %3 = memref.load %arg1[%2] : memref<64xi32, #tpu.memory_space<smem>>
    %c0_i32 = arith.constant 0 : i32
    %c0_i32_0 = arith.constant 0 : i32
    %c0_i32_1 = arith.constant 0 : i32
    return %3, %c0_i32, %c0_i32_0 : i32, i32, i32
  }
  func.func @transform_7(%arg0: i32, %arg1: memref<64xi32, #tpu.memory_space<smem>>) -> (i32, i32, i32) {
    %c8_i32 = arith.constant 8 : i32
    %0 = arith.muli %arg0, %c8_i32 : i32
    %c7_i32 = arith.constant 7 : i32
    %1 = arith.addi %0, %c7_i32 : i32
    %2 = arith.index_cast %1 : i32 to index
    %3 = memref.load %arg1[%2] : memref<64xi32, #tpu.memory_space<smem>>
    %c0_i32 = arith.constant 0 : i32
    %c0_i32_0 = arith.constant 0 : i32
    %c0_i32_1 = arith.constant 0 : i32
    return %3, %c0_i32, %c0_i32_0 : i32, i32, i32
  }
  func.func @transform_8(%arg0: i32, %arg1: memref<64xi32, #tpu.memory_space<smem>>) -> (i32, i32, i32) {
    %c0_i32 = arith.constant 0 : i32
    %c0_i32_0 = arith.constant 0 : i32
    %c0_i32_1 = arith.constant 0 : i32
    return %arg0, %c0_i32, %c0_i32_0 : i32, i32, i32
  }
}

module attributes {stable_mosaic.version = 11 : i64} {
  func.func @_linear_kernel(%arg0: i32, %arg1: i32, %arg2: memref<8x128xf32, #tpu.memory_space<vmem>>, %arg3: memref<128x128xf32, #tpu.memory_space<vmem>>, %arg4: memref<1x128xf32, #tpu.memory_space<vmem>>, %arg5: memref<8x128xf32, #tpu.memory_space<vmem>>) attributes {dimension_semantics = [#tpu.dimension_semantics<parallel>, #tpu.dimension_semantics<parallel>], iteration_bounds = array<i64: 1, 1>, scalar_prefetch = 0 : i64, scratch_operands = 0 : i64, tpu.core_type = #tpu.core_type<tc>, window_params = [{transform_indices = @transform_0, window_bounds = array<i64: 8, 128>}, {transform_indices = @transform_1, window_bounds = array<i64: 128, 128>}, {transform_indices = @transform_2, window_bounds = array<i64: 1, 128>}, {transform_indices = @transform_3, window_bounds = array<i64: 8, 128>}]} {
    %c0 = arith.constant 0 : index
    %c0_0 = arith.constant 0 : index
    %0 = vector.load %arg2[%c0, %c0_0] : memref<8x128xf32, #tpu.memory_space<vmem>>, vector<8x128xf32>
    %c0_1 = arith.constant 0 : index
    %c0_2 = arith.constant 0 : index
    %1 = vector.load %arg3[%c0_1, %c0_2] : memref<128x128xf32, #tpu.memory_space<vmem>>, vector<128x128xf32>
    %cst = arith.constant dense<0.000000e+00> : vector<8x128xf32>
    %2 = tpu.matmul %0, %1, %cst {dimension_numbers = #tpu.dot_dimension_numbers<[1], [0], [0], [1], [0, 0, 1, 1], [], []>} : vector<8x128xf32>, vector<128x128xf32>, vector<8x128xf32> -> vector<8x128xf32>
    %c0_3 = arith.constant 0 : index
    %c0_4 = arith.constant 0 : index
    %3 = vector.load %arg4[%c0_3, %c0_4] : memref<1x128xf32, #tpu.memory_space<vmem>>, vector<1x128xf32>
    %4 = vector.broadcast %3 : vector<1x128xf32> to vector<8x128xf32>
    %5 = arith.addf %2, %4 : vector<8x128xf32>
    %c0_5 = arith.constant 0 : index
    %c0_6 = arith.constant 0 : index
    %6 = vector.load %arg5[%c0_5, %c0_6] : memref<8x128xf32, #tpu.memory_space<vmem>>, vector<8x128xf32>
    tpu.vector_store %arg5[%c0_5, %c0_6], %5 {strides = array<i32>} : memref<8x128xf32, #tpu.memory_space<vmem>>, vector<8x128xf32>,
    return
  }
  func.func @transform_0(%arg0: i32, %arg1: i32) -> (i32, i32) {
    %c0_i32 = arith.constant 0 : i32
    %c0_i32_0 = arith.constant 0 : i32
    return %arg0, %c0_i32 : i32, i32
  }
  func.func @transform_1(%arg0: i32, %arg1: i32) -> (i32, i32) {
    %c0_i32 = arith.constant 0 : i32
    %c0_i32_0 = arith.constant 0 : i32
    return %c0_i32, %arg1 : i32, i32
  }
  func.func @transform_2(%arg0: i32, %arg1: i32) -> (i32, i32) {
    %c0_i32 = arith.constant 0 : i32
    %c0_i32_0 = arith.constant 0 : i32
    return %c0_i32, %arg1 : i32, i32
  }
  func.func @transform_3(%arg0: i32, %arg1: i32) -> (i32, i32) {
    %c0_i32 = arith.constant 0 : i32
    return %arg0, %arg1 : i32, i32
  }
}

</mosaic_0001>

<llo_original>
// kernel: _lambda_.3
$region0: #{_lambda_.3}
  #allocation0 [shape = 'u32[]', space=smem, size = 0x4, offset = 0x4, fixed_abs, tag = 'smem constant byte address 0x4 - core index']
  #allocation1 [shape = 'u32[72,128]{1,0:T(1,128)}', space=vmem, size = 0x9000, scoped, tag = 'internal scratch']
  %s0 = inlined_call_operand.vmem [shape: f32[8,128], index: 0, kind: input, shape index: {}]
  %s1 = inlined_call_operand.vmem [shape: f32[128,128], index: 1, kind: input, shape index: {}]
  %s2 = inlined_call_operand.vmem [shape: f32[1,128], index: 2, kind: input, shape index: {}]
  %s3 = inlined_call_operand.vmem [shape: f32[8,128], index: 3, kind: output, shape index: {}]
  %s4 = sld [smem:[#allocation0]]
  $region22: #{_lambda_.3} parent=0
    _
  %s6 = ssub.s32 1, %s4
  %s7 = scalar_select 0, %s6, %s4
  // Predicated region
  $region2: #{_lambda_.3} parent=0 // pred_check
    _
  $region3: #{_lambda_.3} parent=0 // pred_check_branch
    %9 = sbr.rel (0) target = $region5
  $region4: #{_lambda_.3} parent=0 // pred_region
    _
  $region5: #{_lambda_.3} parent=0 // pred_fallthru
    _
  // Predicated region
  $region6: #{_lambda_.3} parent=0 // pred_check
    _
  $region7: #{_lambda_.3} parent=0 // pred_check_branch
    %11 = sbr.rel (0) target = $region9
  $region8: #{_lambda_.3} parent=0 // pred_region
    _
  $region9: #{_lambda_.3} parent=0 // pred_fallthru
    _
  // Predicated region
  $region10: #{_lambda_.3} parent=0 // pred_check
    _
  $region11: #{_lambda_.3} parent=0 // pred_check_branch
    %13 = sbr.rel (0) target = $region13
  $region12: #{_lambda_.3} parent=0 // pred_region
    _
  $region13: #{_lambda_.3} parent=0 // pred_fallthru
    _
  %v14 = vld [vmem:[%s0] sm:$0xff]
  %v15 = vld [vmem:[%s1] sm:$0xff]
  %v16 = vld [vmem:[%s1 + $0x8] sm:$0xff]
  %v17 = vld [vmem:[%s1 + $0x10] sm:$0xff]
  %v18 = vld [vmem:[%s1 + $0x18] sm:$0xff]
  %v19 = vld [vmem:[%s1 + $0x20] sm:$0xff]
  %v20 = vld [vmem:[%s1 + $0x28] sm:$0xff]
  %v21 = vld [vmem:[%s1 + $0x30] sm:$0xff]
  %v22 = vld [vmem:[%s1 + $0x38] sm:$0xff]
  %v23 = vld [vmem:[%s1 + $0x40] sm:$0xff]
  %v24 = vld [vmem:[%s1 + $0x48] sm:$0xff]
  %v25 = vld [vmem:[%s1 + $0x50] sm:$0xff]
  %v26 = vld [vmem:[%s1 + $0x58] sm:$0xff]
  %v27 = vld [vmem:[%s1 + $0x60] sm:$0xff]
  %v28 = vld [vmem:[%s1 + $0x68] sm:$0xff]
  %v29 = vld [vmem:[%s1 + $0x70] sm:$0xff]
  %v30 = vld [vmem:[%s1 + $0x78] sm:$0xff]
  %v31 = vld [vmem:[%s2] sm:$0x1]
  %v33 = vperm.slane %v31, 0
  %35 = vmatpush.msra.mxu0 %v30
  %36 = vmatpush.msra.mxu0 %v29
  %37 = vmatpush.msra.mxu0 %v28
  %38 = vmatpush.msra.mxu0 %v27
  %39 = vmatpush.msra.mxu0 %v26
  %40 = vmatpush.msra.mxu0 %v25
  %41 = vmatpush.msra.mxu0 %v24
  %42 = vmatpush.msra.mxu0 %v23
  %43 = vmatpush.msra.mxu0 %v22
  %44 = vmatpush.msra.mxu0 %v21
  %45 = vmatpush.msra.mxu0 %v20
  %46 = vmatpush.msra.mxu0 %v19
  %47 = vmatpush.msra.mxu0 %v18
  %48 = vmatpush.msra.mxu0 %v17
  %49 = vmatpush.msra.mxu0 %v16
  %50 = vmatpush.msra.mxu0 %v15
  %51 = vmatmul.f32.gmra.mxu0 %v14
  %v52 = vpop.f32.mrf.mxu0
  %v53 = vadd.f32 %v33, %v52
  %54 = vdwg.mxu0
  %55 = vst [vmem:[%s3] sm:$0xff] %v53
  // Predicated region
  $region14: #{_lambda_.3} parent=0 // pred_check
    _
  $region15: #{_lambda_.3} parent=0 // pred_check_branch
    %57 = sbr.rel (0) target = $region17
  $region16: #{_lambda_.3} parent=0 // pred_region
    _
  $region17: #{_lambda_.3} parent=0 // pred_fallthru
    _
  // Predicated region
  $region18: #{_lambda_.3} parent=0 // pred_check
    _
  $region19: #{_lambda_.3} parent=0 // pred_check_branch
    %59 = sbr.rel (0) target = $region21
  $region20: #{_lambda_.3} parent=0 // pred_region
    _
  $region21: #{_lambda_.3} parent=0 // pred_fallthru
    _

// kernel: _lambda_.2
$region0: #{_lambda_.2}
  #allocation0 [shape = 'u32[]', space=smem, size = 0x4, offset = 0x4, fixed_abs, tag = 'smem constant byte address 0x4 - core index']
  #allocation1 [shape = 'u32[72,128]{1,0:T(1,128)}', space=vmem, size = 0x9000, scoped, tag = 'internal scratch']
  #allocation2 [shape = 's32[1]{0}', space=sflag, size = 0x4, scoped, tag = 'scoped memory for _lambda_.2']
  #allocation3 [shape = 'u8[512]{0}', space=smem, size = 0x200, scoped, tag = 'prefetched SMEM operand 0']
  %s0 = inlined_call_operand.vmem [shape: s32[64], index: 0, kind: input, shape index: {}]
  %s1 = inlined_call_operand.vmem [shape: f32[64,1,128], index: 1, kind: input, shape index: {}, may-alias: {1,2,3,4,5,6,7,8}]
  %s2 = inlined_call_operand.vmem [shape: f32[64,1,128], index: 2, kind: input, shape index: {}, may-alias: {1,2,3,4,5,6,7,8}]
  %s3 = inlined_call_operand.vmem [shape: f32[64,1,128], index: 3, kind: input, shape index: {}, may-alias: {1,2,3,4,5,6,7,8}]
  %s4 = inlined_call_operand.vmem [shape: f32[64,1,128], index: 4, kind: input, shape index: {}, may-alias: {1,2,3,4,5,6,7,8}]
  %s5 = inlined_call_operand.vmem [shape: f32[64,1,128], index: 5, kind: input, shape index: {}, may-alias: {1,2,3,4,5,6,7,8}]
  %s6 = inlined_call_operand.vmem [shape: f32[64,1,128], index: 6, kind: input, shape index: {}, may-alias: {1,2,3,4,5,6,7,8}]
  %s7 = inlined_call_operand.vmem [shape: f32[64,1,128], index: 7, kind: input, shape index: {}, may-alias: {1,2,3,4,5,6,7,8}]
  %s8 = inlined_call_operand.vmem [shape: f32[64,1,128], index: 8, kind: input, shape index: {}, may-alias: {1,2,3,4,5,6,7,8}]
  %s9 = inlined_call_operand.vmem [shape: f32[8,1,128], index: 9, kind: output, shape index: {}]
  %s10 = sld [smem:[#allocation0]]
  $region65: #{_lambda_.2} parent=0
    _
  %s12 = ssub.s32 1, %s10
  %s13 = scalar_select 0, %s12, %s10
  %s15 = sshll.u32 %s0, 4
  %s16 = int_to_ptr.vmem [resolvable:$true] %s15
  %18 = dma.vmem_to_smem %s16, 16, [#allocation3], [#allocation2]
  %20 = dma.done [#allocation2], 16
  %21 = sfence
  loop: start=0, step=1, limit=10
  $region2: #{_lambda_.2} parent=0 // loop_pre_header
    _
  $region3: #{_lambda_.2} parent=0 // loop_header
    %s23 = sphi 0, %s27
    %p24 = scmp.ge.s32.totalorder %s23, 10
    %s37 = sphi 0, %s39
    %s40 = sphi 0, %s37
    %s41 = sphi 0, %s40
    %s57 = sphi 0, %s41
    %s69 = sphi 0, %s71
    %s72 = sphi 0, %s69
    %s73 = sphi 0, %s72
    %s89 = sphi 0, %s73
    %s101 = sphi 0, %s103
    %s104 = sphi 0, %s101
    %s105 = sphi 0, %s104
    %s121 = sphi 0, %s105
    %s133 = sphi 0, %s135
    %s136 = sphi 0, %s133
    %s137 = sphi 0, %s136
    %s153 = sphi 0, %s137
    %s165 = sphi 0, %s167
    %s168 = sphi 0, %s165
    %s169 = sphi 0, %s168
    %s185 = sphi 0, %s169
    %s197 = sphi 0, %s199
    %s200 = sphi 0, %s197
    %s201 = sphi 0, %s200
    %s217 = sphi 0, %s201
    %s229 = sphi 0, %s231
    %s232 = sphi 0, %s229
    %s233 = sphi 0, %s232
    %s249 = sphi 0, %s233
    %s261 = sphi 0, %s263
    %s264 = sphi 0, %s261
    %s265 = sphi 0, %s264
    %s281 = sphi 0, %s265
    %s287 = sphi 0, %s289
    %s290 = sphi 0, %s287
    %s291 = sphi 0, %s290
    %s307 = sphi 0, %s291
  $region4: #{_lambda_.2} parent=0 // loop_header_branch
    %26 = sbr.rel (%p24) target = $region8
  $region5: #{_lambda_.2} parent=0 // loop_body
    %s28 = ssub.s32 %s23, 1
    %s29 = ssub.s32 %s23, 2
    %s30 = sadd.s32 %s23, 1
    %s31 = smul.u32 %s23, 8
    %s32 = sld [smem:[#allocation3 + %s31]]
    %s33 = smul.u32 %s30, 8
    %s34 = sld [smem:[#allocation3 + %s33]]
    %s35 = ssub.s32 %s32, %s34
    %p36 = scmp.eq.s32.totalorder %s35, 0
    %s38 = sadd.s32 %s37, 1
    %s39 = scalar_select %p36, %s37, %s38
    %p42 = pneg %p36
    %p43 = scmp.eq.s32.totalorder %s23, 7
    %p44 = por %p42, %p43
    %p45 = scmp.ne.s32.totalorder %s37, %s40
    %p46 = scmp.eq.s32.totalorder %s23, 0
    %p47 = por %p45, %p46
    %p48 = scmp.ne.s32.totalorder %s37, %s40
    %p49 = scmp.eq.s32.totalorder %s28, 7
    %p50 = por %p48, %p49
    %p51 = scmp.ne.s32.totalorder %s40, %s41
    %p52 = scmp.eq.s32.totalorder %s28, 0
    %p53 = por %p51, %p52
    %p54 = scmp.ne.s32.totalorder %s40, %s41
    %p55 = scmp.eq.s32.totalorder %s29, 7
    %p56 = por %p54, %p55
    %p58 = scmp.ne.s32.totalorder %s41, %s57
    %p59 = scmp.eq.s32.totalorder %s29, 0
    %p60 = por %p58, %p59
    %s61 = smul.u32 %s23, 8
    %s62 = sadd.s32 %s61, 1
    %s63 = sld [smem:[#allocation3 + %s62]]
    %s64 = smul.u32 %s30, 8
    %s65 = sadd.s32 %s64, 1
    %s66 = sld [smem:[#allocation3 + %s65]]
    %s67 = ssub.s32 %s63, %s66
    %p68 = scmp.eq.s32.totalorder %s67, 0
    %s70 = sadd.s32 %s69, 1
    %s71 = scalar_select %p68, %s69, %s70
    %p74 = pneg %p68
    %p75 = scmp.eq.s32.totalorder %s23, 7
    %p76 = por %p74, %p75
    %p77 = scmp.ne.s32.totalorder %s69, %s72
    %p78 = scmp.eq.s32.totalorder %s23, 0
    %p79 = por %p77, %p78
    %p80 = scmp.ne.s32.totalorder %s69, %s72
    %p81 = scmp.eq.s32.totalorder %s28, 7
    %p82 = por %p80, %p81
    %p83 = scmp.ne.s32.totalorder %s72, %s73
    %p84 = scmp.eq.s32.totalorder %s28, 0
    %p85 = por %p83, %p84
    %p86 = scmp.ne.s32.totalorder %s72, %s73
    %p87 = scmp.eq.s32.totalorder %s29, 7
    %p88 = por %p86, %p87
    %p90 = scmp.ne.s32.totalorder %s73, %s89
    %p91 = scmp.eq.s32.totalorder %s29, 0
    %p92 = por %p90, %p91
    %s93 = smul.u32 %s23, 8
    %s94 = sadd.s32 %s93, 2
    %s95 = sld [smem:[#allocation3 + %s94]]
    %s96 = smul.u32 %s30, 8
    %s97 = sadd.s32 %s96, 2
    %s98 = sld [smem:[#allocation3 + %s97]]
    %s99 = ssub.s32 %s95, %s98
    %p100 = scmp.eq.s32.totalorder %s99, 0
    %s102 = sadd.s32 %s101, 1
    %s103 = scalar_select %p100, %s101, %s102
    %p106 = pneg %p100
    %p107 = scmp.eq.s32.totalorder %s23, 7
    %p108 = por %p106, %p107
    %p109 = scmp.ne.s32.totalorder %s101, %s104
    %p110 = scmp.eq.s32.totalorder %s23, 0
    %p111 = por %p109, %p110
    %p112 = scmp.ne.s32.totalorder %s101, %s104
    %p113 = scmp.eq.s32.totalorder %s28, 7
    %p114 = por %p112, %p113
    %p115 = scmp.ne.s32.totalorder %s104, %s105
    %p116 = scmp.eq.s32.totalorder %s28, 0
    %p117 = por %p115, %p116
    %p118 = scmp.ne.s32.totalorder %s104, %s105
    %p119 = scmp.eq.s32.totalorder %s29, 7
    %p120 = por %p118, %p119
    %p122 = scmp.ne.s32.totalorder %s105, %s121
    %p123 = scmp.eq.s32.totalorder %s29, 0
    %p124 = por %p122, %p123
    %s125 = smul.u32 %s23, 8
    %s126 = sadd.s32 %s125, 3
    %s127 = sld [smem:[#allocation3 + %s126]]
    %s128 = smul.u32 %s30, 8
    %s129 = sadd.s32 %s128, 3
    %s130 = sld [smem:[#allocation3 + %s129]]
    %s131 = ssub.s32 %s127, %s130
    %p132 = scmp.eq.s32.totalorder %s131, 0
    %s134 = sadd.s32 %s133, 1
    %s135 = scalar_select %p132, %s133, %s134
    %p138 = pneg %p132
    %p139 = scmp.eq.s32.totalorder %s23, 7
    %p140 = por %p138, %p139
    %p141 = scmp.ne.s32.totalorder %s133, %s136
    %p142 = scmp.eq.s32.totalorder %s23, 0
    %p143 = por %p141, %p142
    %p144 = scmp.ne.s32.totalorder %s133, %s136
    %p145 = scmp.eq.s32.totalorder %s28, 7
    %p146 = por %p144, %p145
    %p147 = scmp.ne.s32.totalorder %s136, %s137
    %p148 = scmp.eq.s32.totalorder %s28, 0
    %p149 = por %p147, %p148
    %p150 = scmp.ne.s32.totalorder %s136, %s137
    %p151 = scmp.eq.s32.totalorder %s29, 7
    %p152 = por %p150, %p151
    %p154 = scmp.ne.s32.totalorder %s137, %s153
    %p155 = scmp.eq.s32.totalorder %s29, 0
    %p156 = por %p154, %p155
    %s157 = smul.u32 %s23, 8
    %s158 = sadd.s32 %s157, 4
    %s159 = sld [smem:[#allocation3 + %s158]]
    %s160 = smul.u32 %s30, 8
    %s161 = sadd.s32 %s160, 4
    %s162 = sld [smem:[#allocation3 + %s161]]
    %s163 = ssub.s32 %s159, %s162
    %p164 = scmp.eq.s32.totalorder %s163, 0
    %s166 = sadd.s32 %s165, 1
    %s167 = scalar_select %p164, %s165, %s166
    %p170 = pneg %p164
    %p171 = scmp.eq.s32.totalorder %s23, 7
    %p172 = por %p170, %p171
    %p173 = scmp.ne.s32.totalorder %s165, %s168
    %p174 = scmp.eq.s32.totalorder %s23, 0
    %p175 = por %p173, %p174
    %p176 = scmp.ne.s32.totalorder %s165, %s168
    %p177 = scmp.eq.s32.totalorder %s28, 7
    %p178 = por %p176, %p177
    %p179 = scmp.ne.s32.totalorder %s168, %s169
    %p180 = scmp.eq.s32.totalorder %s28, 0
    %p181 = por %p179, %p180
    %p182 = scmp.ne.s32.totalorder %s168, %s169
    %p183 = scmp.eq.s32.totalorder %s29, 7
    %p184 = por %p182, %p183
    %p186 = scmp.ne.s32.totalorder %s169, %s185
    %p187 = scmp.eq.s32.totalorder %s29, 0
    %p188 = por %p186, %p187
    %s189 = smul.u32 %s23, 8
    %s190 = sadd.s32 %s189, 5
    %s191 = sld [smem:[#allocation3 + %s190]]
    %s192 = smul.u32 %s30, 8
    %s193 = sadd.s32 %s192, 5
    %s194 = sld [smem:[#allocation3 + %s193]]
    %s195 = ssub.s32 %s191, %s194
    %p196 = scmp.eq.s32.totalorder %s195, 0
    %s198 = sadd.s32 %s197, 1
    %s199 = scalar_select %p196, %s197, %s198
    %p202 = pneg %p196
    %p203 = scmp.eq.s32.totalorder %s23, 7
    %p204 = por %p202, %p203
    %p205 = scmp.ne.s32.totalorder %s197, %s200
    %p206 = scmp.eq.s32.totalorder %s23, 0
    %p207 = por %p205, %p206
    %p208 = scmp.ne.s32.totalorder %s197, %s200
    %p209 = scmp.eq.s32.totalorder %s28, 7
    %p210 = por %p208, %p209
    %p211 = scmp.ne.s32.totalorder %s200, %s201
    %p212 = scmp.eq.s32.totalorder %s28, 0
    %p213 = por %p211, %p212
    %p214 = scmp.ne.s32.totalorder %s200, %s201
    %p215 = scmp.eq.s32.totalorder %s29, 7
    %p216 = por %p214, %p215
    %p218 = scmp.ne.s32.totalorder %s201, %s217
    %p219 = scmp.eq.s32.totalorder %s29, 0
    %p220 = por %p218, %p219
    %s221 = smul.u32 %s23, 8
    %s222 = sadd.s32 %s221, 6
    %s223 = sld [smem:[#allocation3 + %s222]]
    %s224 = smul.u32 %s30, 8
    %s225 = sadd.s32 %s224, 6
    %s226 = sld [smem:[#allocation3 + %s225]]
    %s227 = ssub.s32 %s223, %s226
    %p228 = scmp.eq.s32.totalorder %s227, 0
    %s230 = sadd.s32 %s229, 1
    %s231 = scalar_select %p228, %s229, %s230
    %p234 = pneg %p228
    %p235 = scmp.eq.s32.totalorder %s23, 7
    %p236 = por %p234, %p235
    %p237 = scmp.ne.s32.totalorder %s229, %s232
    %p238 = scmp.eq.s32.totalorder %s23, 0
    %p239 = por %p237, %p238
    %p240 = scmp.ne.s32.totalorder %s229, %s232
    %p241 = scmp.eq.s32.totalorder %s28, 7
    %p242 = por %p240, %p241
    %p243 = scmp.ne.s32.totalorder %s232, %s233
    %p244 = scmp.eq.s32.totalorder %s28, 0
    %p245 = por %p243, %p244
    %p246 = scmp.ne.s32.totalorder %s232, %s233
    %p247 = scmp.eq.s32.totalorder %s29, 7
    %p248 = por %p246, %p247
    %p250 = scmp.ne.s32.totalorder %s233, %s249
    %p251 = scmp.eq.s32.totalorder %s29, 0
    %p252 = por %p250, %p251
    %s253 = smul.u32 %s23, 8
    %s254 = sadd.s32 %s253, 7
    %s255 = sld [smem:[#allocation3 + %s254]]
    %s256 = smul.u32 %s30, 8
    %s257 = sadd.s32 %s256, 7
    %s258 = sld [smem:[#allocation3 + %s257]]
    %s259 = ssub.s32 %s255, %s258
    %p260 = scmp.eq.s32.totalorder %s259, 0
    %s262 = sadd.s32 %s261, 1
    %s263 = scalar_select %p260, %s261, %s262
    %p266 = pneg %p260
    %p267 = scmp.eq.s32.totalorder %s23, 7
    %p268 = por %p266, %p267
    %p269 = scmp.ne.s32.totalorder %s261, %s264
    %p270 = scmp.eq.s32.totalorder %s23, 0
    %p271 = por %p269, %p270
    %p272 = scmp.ne.s32.totalorder %s261, %s264
    %p273 = scmp.eq.s32.totalorder %s28, 7
    %p274 = por %p272, %p273
    %p275 = scmp.ne.s32.totalorder %s264, %s265
    %p276 = scmp.eq.s32.totalorder %s28, 0
    %p277 = por %p275, %p276
    %p278 = scmp.ne.s32.totalorder %s264, %s265
    %p279 = scmp.eq.s32.totalorder %s29, 7
    %p280 = por %p278, %p279
    %p282 = scmp.ne.s32.totalorder %s265, %s281
    %p283 = scmp.eq.s32.totalorder %s29, 0
    %p284 = por %p282, %p283
    %s285 = ssub.s32 %s23, %s30
    %p286 = scmp.eq.s32.totalorder %s285, 0
    %s288 = sadd.s32 %s287, 1
    %s289 = scalar_select %p286, %s287, %s288
    %p292 = pneg %p286
    %p293 = scmp.eq.s32.totalorder %s23, 7
    %p294 = por %p292, %p293
    %p295 = scmp.ne.s32.totalorder %s287, %s290
    %p296 = scmp.eq.s32.totalorder %s23, 0
    %p297 = por %p295, %p296
    %p298 = scmp.ne.s32.totalorder %s287, %s290
    %p299 = scmp.eq.s32.totalorder %s28, 7
    %p300 = por %p298, %p299
    %p301 = scmp.ne.s32.totalorder %s290, %s291
    %p302 = scmp.eq.s32.totalorder %s28, 0
    %p303 = por %p301, %p302
    %p304 = scmp.ne.s32.totalorder %s290, %s291
    %p305 = scmp.eq.s32.totalorder %s29, 7
    %p306 = por %p304, %p305
    %p308 = scmp.ne.s32.totalorder %s291, %s307
    %p309 = scmp.eq.s32.totalorder %s29, 0
    %p310 = por %p308, %p309
    %p311 = scmp.le.s32.totalorder 1, %s23
    %p312 = scmp.lt.s32.totalorder %s23, 9
    %p313 = pnand %p311, %p312
    %p314 = pneg %p313
    // Predicated region
    $region9: #{_lambda_.2} parent=5 // pred_check
      _
    $region10: #{_lambda_.2} parent=5 // pred_check_branch
      %316 = sbr.rel (%p313) target = $region12
    $region11: #{_lambda_.2} parent=5 // pred_region
      %s317 = ssub.s32 %s23, 1
    $region12: #{_lambda_.2} parent=5 // pred_fallthru
      _
    %p318 = scmp.lt.s32.totalorder %s23, 8
    // Predicated region
    $region13: #{_lambda_.2} parent=5 // pred_check
      %p319 = pneg %p318
    $region14: #{_lambda_.2} parent=5 // pred_check_branch
      %321 = sbr.rel (%p319) target = $region16
    $region15: #{_lambda_.2} parent=5 // pred_region
      // Predicated region
      $region17: #{_lambda_.2} parent=15 // pred_check
        %p322 = pneg %p47
      $region18: #{_lambda_.2} parent=15 // pred_check_branch
        %324 = sbr.rel (%p322) target = $region20
      $region19: #{_lambda_.2} parent=15 // pred_region
        %s325 = smul.u32 %s23, 8
        %s326 = sld [smem:[#allocation3 + %s325]]
        %p327 = scmp.lt.s32.totalorder %s326, 63
        %s328 = scalar_select %p327, %s326, 63
        %s329 = scalar_lea.vmem %s1, %s328
        %s330 = smul.u32 %s23, 8
        %s331 = sld [smem:[#allocation3 + %s330]]
      $region20: #{_lambda_.2} parent=15 // pred_fallthru
        _
      // Predicated region
      $region21: #{_lambda_.2} parent=15 // pred_check
        %p332 = pneg %p79
      $region22: #{_lambda_.2} parent=15 // pred_check_branch
        %334 = sbr.rel (%p332) target = $region24
      $region23: #{_lambda_.2} parent=15 // pred_region
        %s335 = smul.u32 %s23, 8
        %s336 = sadd.s32 %s335, 1
        %s337 = sld [smem:[#allocation3 + %s336]]
        %p338 = scmp.lt.s32.totalorder %s337, 63
        %s339 = scalar_select %p338, %s337, 63
        %s340 = scalar_lea.vmem %s2, %s339
        %s341 = smul.u32 %s23, 8
        %s342 = sadd.s32 %s341, 1
        %s343 = sld [smem:[#allocation3 + %s342]]
      $region24: #{_lambda_.2} parent=15 // pred_fallthru
        _
      // Predicated region
      $region25: #{_lambda_.2} parent=15 // pred_check
        %p344 = pneg %p111
      $region26: #{_lambda_.2} parent=15 // pred_check_branch
        %346 = sbr.rel (%p344) target = $region28
      $region27: #{_lambda_.2} parent=15 // pred_region
        %s347 = smul.u32 %s23, 8
        %s348 = sadd.s32 %s347, 2
        %s349 = sld [smem:[#allocation3 + %s348]]
        %p350 = scmp.lt.s32.totalorder %s349, 63
        %s351 = scalar_select %p350, %s349, 63
        %s352 = scalar_lea.vmem %s3, %s351
        %s353 = smul.u32 %s23, 8
        %s354 = sadd.s32 %s353, 2
        %s355 = sld [smem:[#allocation3 + %s354]]
      $region28: #{_lambda_.2} parent=15 // pred_fallthru
        _
      // Predicated region
      $region29: #{_lambda_.2} parent=15 // pred_check
        %p356 = pneg %p143
      $region30: #{_lambda_.2} parent=15 // pred_check_branch
        %358 = sbr.rel (%p356) target = $region32
      $region31: #{_lambda_.2} parent=15 // pred_region
        %s359 = smul.u32 %s23, 8
        %s360 = sadd.s32 %s359, 3
        %s361 = sld [smem:[#allocation3 + %s360]]
        %p362 = scmp.lt.s32.totalorder %s361, 63
        %s363 = scalar_select %p362, %s361, 63
        %s364 = scalar_lea.vmem %s4, %s363
        %s365 = smul.u32 %s23, 8
        %s366 = sadd.s32 %s365, 3
        %s367 = sld [smem:[#allocation3 + %s366]]
      $region32: #{_lambda_.2} parent=15 // pred_fallthru
        _
      // Predicated region
      $region33: #{_lambda_.2} parent=15 // pred_check
        %p368 = pneg %p175
      $region34: #{_lambda_.2} parent=15 // pred_check_branch
        %370 = sbr.rel (%p368) target = $region36
      $region35: #{_lambda_.2} parent=15 // pred_region
        %s371 = smul.u32 %s23, 8
        %s372 = sadd.s32 %s371, 4
        %s373 = sld [smem:[#allocation3 + %s372]]
        %p374 = scmp.lt.s32.totalorder %s373, 63
        %s375 = scalar_select %p374, %s373, 63
        %s376 = scalar_lea.vmem %s5, %s375
        %s377 = smul.u32 %s23, 8
        %s378 = sadd.s32 %s377, 4
        %s379 = sld [smem:[#allocation3 + %s378]]
      $region36: #{_lambda_.2} parent=15 // pred_fallthru
        _
      // Predicated region
      $region37: #{_lambda_.2} parent=15 // pred_check
        %p380 = pneg %p207
      $region38: #{_lambda_.2} parent=15 // pred_check_branch
        %382 = sbr.rel (%p380) target = $region40
      $region39: #{_lambda_.2} parent=15 // pred_region
        %s383 = smul.u32 %s23, 8
        %s384 = sadd.s32 %s383, 5
        %s385 = sld [smem:[#allocation3 + %s384]]
        %p386 = scmp.lt.s32.totalorder %s385, 63
        %s387 = scalar_select %p386, %s385, 63
        %s388 = scalar_lea.vmem %s6, %s387
        %s389 = smul.u32 %s23, 8
        %s390 = sadd.s32 %s389, 5
        %s391 = sld [smem:[#allocation3 + %s390]]
      $region40: #{_lambda_.2} parent=15 // pred_fallthru
        _
      // Predicated region
      $region41: #{_lambda_.2} parent=15 // pred_check
        %p392 = pneg %p239
      $region42: #{_lambda_.2} parent=15 // pred_check_branch
        %394 = sbr.rel (%p392) target = $region44
      $region43: #{_lambda_.2} parent=15 // pred_region
        %s395 = smul.u32 %s23, 8
        %s396 = sadd.s32 %s395, 6
        %s397 = sld [smem:[#allocation3 + %s396]]
        %p398 = scmp.lt.s32.totalorder %s397, 63
        %s399 = scalar_select %p398, %s397, 63
        %s400 = scalar_lea.vmem %s7, %s399
        %s401 = smul.u32 %s23, 8
        %s402 = sadd.s32 %s401, 6
        %s403 = sld [smem:[#allocation3 + %s402]]
      $region44: #{_lambda_.2} parent=15 // pred_fallthru
        _
      // Predicated region
      $region45: #{_lambda_.2} parent=15 // pred_check
        %p404 = pneg %p271
      $region46: #{_lambda_.2} parent=15 // pred_check_branch
        %406 = sbr.rel (%p404) target = $region48
      $region47: #{_lambda_.2} parent=15 // pred_region
        %s407 = smul.u32 %s23, 8
        %s408 = sadd.s32 %s407, 7
        %s409 = sld [smem:[#allocation3 + %s408]]
        %p410 = scmp.lt.s32.totalorder %s409, 63
        %s411 = scalar_select %p410, %s409, 63
        %s412 = scalar_lea.vmem %s8, %s411
        %s413 = smul.u32 %s23, 8
        %s414 = sadd.s32 %s413, 7
        %s415 = sld [smem:[#allocation3 + %s414]]
      $region48: #{_lambda_.2} parent=15 // pred_fallthru
        _
    $region16: #{_lambda_.2} parent=5 // pred_fallthru
      _
    %p416 = scmp.le.s32.totalorder 1, %s23
    %p417 = scmp.lt.s32.totalorder %s23, 9
    %p418 = pnand %p416, %p417
    %p419 = pneg %p418
    // Predicated region
    $region49: #{_lambda_.2} parent=5 // pred_check
      _
    $region50: #{_lambda_.2} parent=5 // pred_check_branch
      %421 = sbr.rel (%p418) target = $region52
    $region51: #{_lambda_.2} parent=5 // pred_region
      %s422 = ssub.s32 %s23, 1
      %s423 = smul.u32 %s28, 8
      %s424 = sld [smem:[#allocation3 + %s423]]
      %p425 = scmp.lt.s32.totalorder %s424, 63
      %s426 = scalar_select %p425, %s424, 63
      %s427 = scalar_lea.vmem %s1, %s426
      %p428 = pneg %p53
      %p429 = pneg %p50
      %s430 = smul.u32 %s28, 8
      %s431 = sadd.s32 %s430, 1
      %s432 = sld [smem:[#allocation3 + %s431]]
      %p433 = scmp.lt.s32.totalorder %s432, 63
      %s434 = scalar_select %p433, %s432, 63
      %s435 = scalar_lea.vmem %s2, %s434
      %p436 = pneg %p85
      %p437 = pneg %p82
      %s438 = smul.u32 %s28, 8
      %s439 = sadd.s32 %s438, 2
      %s440 = sld [smem:[#allocation3 + %s439]]
      %p441 = scmp.lt.s32.totalorder %s440, 63
      %s442 = scalar_select %p441, %s440, 63
      %s443 = scalar_lea.vmem %s3, %s442
      %p444 = pneg %p117
      %p445 = pneg %p114
      %s446 = smul.u32 %s28, 8
      %s447 = sadd.s32 %s446, 3
      %s448 = sld [smem:[#allocation3 + %s447]]
      %p449 = scmp.lt.s32.totalorder %s448, 63
      %s450 = scalar_select %p449, %s448, 63
      %s451 = scalar_lea.vmem %s4, %s450
      %p452 = pneg %p149
      %p453 = pneg %p146
      %s454 = smul.u32 %s28, 8
      %s455 = sadd.s32 %s454, 4
      %s456 = sld [smem:[#allocation3 + %s455]]
      %p457 = scmp.lt.s32.totalorder %s456, 63
      %s458 = scalar_select %p457, %s456, 63
      %s459 = scalar_lea.vmem %s5, %s458
      %p460 = pneg %p181
      %p461 = pneg %p178
      %s462 = smul.u32 %s28, 8
      %s463 = sadd.s32 %s462, 5
      %s464 = sld [smem:[#allocation3 + %s463]]
      %p465 = scmp.lt.s32.totalorder %s464, 63
      %s466 = scalar_select %p465, %s464, 63
      %s467 = scalar_lea.vmem %s6, %s466
      %p468 = pneg %p213
      %p469 = pneg %p210
      %s470 = smul.u32 %s28, 8
      %s471 = sadd.s32 %s470, 6
      %s472 = sld [smem:[#allocation3 + %s471]]
      %p473 = scmp.lt.s32.totalorder %s472, 63
      %s474 = scalar_select %p473, %s472, 63
      %s475 = scalar_lea.vmem %s7, %s474
      %p476 = pneg %p245
      %p477 = pneg %p242
      %s478 = smul.u32 %s28, 8
      %s479 = sadd.s32 %s478, 7
      %s480 = sld [smem:[#allocation3 + %s479]]
      %p481 = scmp.lt.s32.totalorder %s480, 63
      %s482 = scalar_select %p481, %s480, 63
      %s483 = scalar_lea.vmem %s8, %s482
      %p484 = pneg %p277
      %p485 = pneg %p274
      %p486 = pneg %p303
      %p487 = pneg %p300
      %p488 = scmp.lt.s32.totalorder %s28, 7
      %s489 = scalar_select %p488, %s28, 7
      %s490 = scalar_lea.vmem %s9, %s489
      %s491 = smul.u32 %s28, 8
      %s492 = sld [smem:[#allocation3 + %s491]]
      %p493 = scmp.lt.s32.totalorder %s492, 63
      %s494 = scalar_select %p493, %s492, 63
      %s495 = scalar_lea.vmem %s1, %s494
      %s496 = smul.u32 %s28, 8
      %s497 = sld [smem:[#allocation3 + %s496]]
      %s498 = smul.u32 %s28, 8
      %s499 = sadd.s32 %s498, 1
      %s500 = sld [smem:[#allocation3 + %s499]]
      %p501 = scmp.lt.s32.totalorder %s500, 63
      %s502 = scalar_select %p501, %s500, 63
      %s503 = scalar_lea.vmem %s2, %s502
      %s504 = smul.u32 %s28, 8
      %s505 = sadd.s32 %s504, 1
      %s506 = sld [smem:[#allocation3 + %s505]]
      %s507 = smul.u32 %s28, 8
      %s508 = sadd.s32 %s507, 2
      %s509 = sld [smem:[#allocation3 + %s508]]
      %p510 = scmp.lt.s32.totalorder %s509, 63
      %s511 = scalar_select %p510, %s509, 63
      %s512 = scalar_lea.vmem %s3, %s511
      %s513 = smul.u32 %s28, 8
      %s514 = sadd.s32 %s513, 2
      %s515 = sld [smem:[#allocation3 + %s514]]
      %s516 = smul.u32 %s28, 8
      %s517 = sadd.s32 %s516, 3
      %s518 = sld [smem:[#allocation3 + %s517]]
      %p519 = scmp.lt.s32.totalorder %s518, 63
      %s520 = scalar_select %p519, %s518, 63
      %s521 = scalar_lea.vmem %s4, %s520
      %s522 = smul.u32 %s28, 8
      %s523 = sadd.s32 %s522, 3
      %s524 = sld [smem:[#allocation3 + %s523]]
      %s525 = smul.u32 %s28, 8
      %s526 = sadd.s32 %s525, 4
      %s527 = sld [smem:[#allocation3 + %s526]]
      %p528 = scmp.lt.s32.totalorder %s527, 63
      %s529 = scalar_select %p528, %s527, 63
      %s530 = scalar_lea.vmem %s5, %s529
      %s531 = smul.u32 %s28, 8
      %s532 = sadd.s32 %s531, 4
      %s533 = sld [smem:[#allocation3 + %s532]]
      %s534 = smul.u32 %s28, 8
      %s535 = sadd.s32 %s534, 5
      %s536 = sld [smem:[#allocation3 + %s535]]
      %p537 = scmp.lt.s32.totalorder %s536, 63
      %s538 = scalar_select %p537, %s536, 63
      %s539 = scalar_lea.vmem %s6, %s538
      %s540 = smul.u32 %s28, 8
      %s541 = sadd.s32 %s540, 5
      %s542 = sld [smem:[#allocation3 + %s541]]
      %s543 = smul.u32 %s28, 8
      %s544 = sadd.s32 %s543, 6
      %s545 = sld [smem:[#allocation3 + %s544]]
      %p546 = scmp.lt.s32.totalorder %s545, 63
      %s547 = scalar_select %p546, %s545, 63
      %s548 = scalar_lea.vmem %s7, %s547
      %s549 = smul.u32 %s28, 8
      %s550 = sadd.s32 %s549, 6
      %s551 = sld [smem:[#allocation3 + %s550]]
      %s552 = smul.u32 %s28, 8
      %s553 = sadd.s32 %s552, 7
      %s554 = sld [smem:[#allocation3 + %s553]]
      %p555 = scmp.lt.s32.totalorder %s554, 63
      %s556 = scalar_select %p555, %s554, 63
      %s557 = scalar_lea.vmem %s8, %s556
      %s558 = smul.u32 %s28, 8
      %s559 = sadd.s32 %s558, 7
      %s560 = sld [smem:[#allocation3 + %s559]]
      %p561 = scmp.lt.s32.totalorder %s28, 7
      %s562 = scalar_select %p561, %s28, 7
      %s563 = scalar_lea.vmem %s9, %s562
      %v564 = vld [vmem:[%s495] sm:$0x1]
      %v565 = vld [vmem:[%s503] sm:$0x1]
      %v566 = vadd.f32 %v564, %v565
      %v567 = vld [vmem:[%s512] sm:$0x1]
      %v568 = vadd.f32 %v566, %v567
      %v569 = vld [vmem:[%s521] sm:$0x1]
      %v570 = vadd.f32 %v568, %v569
      %v571 = vld [vmem:[%s530] sm:$0x1]
      %v572 = vadd.f32 %v570, %v571
      %v573 = vld [vmem:[%s539] sm:$0x1]
      %v574 = vadd.f32 %v572, %v573
      %v575 = vld [vmem:[%s548] sm:$0x1]
      %v576 = vadd.f32 %v574, %v575
      %v577 = vld [vmem:[%s557] sm:$0x1]
      %v578 = vadd.f32 %v576, %v577
      %579 = vst [vmem:[%s563] sm:$0x1] %v578
      %p580 = scmp.lt.s32.totalorder %s28, 7
      %s581 = scalar_select %p580, %s28, 7
      %s582 = scalar_lea.vmem %s9, %s581
      // Predicated region
      $region53: #{_lambda_.2} parent=51 // pred_check
        %p583 = pneg %p300
      $region54: #{_lambda_.2} parent=51 // pred_check_branch
        %585 = sbr.rel (%p583) target = $region56
      $region55: #{_lambda_.2} parent=51 // pred_region
        _
      $region56: #{_lambda_.2} parent=51 // pred_fallthru
        _
    $region52: #{_lambda_.2} parent=5 // pred_fallthru
      _
    %p586 = scmp.le.s32.totalorder 2, %s23
    // Predicated region
    $region57: #{_lambda_.2} parent=5 // pred_check
      %p587 = pneg %p586
    $region58: #{_lambda_.2} parent=5 // pred_check_branch
      %589 = sbr.rel (%p587) target = $region60
    $region59: #{_lambda_.2} parent=5 // pred_region
      %s590 = ssub.s32 %s23, 2
      // Predicated region
      $region61: #{_lambda_.2} parent=59 // pred_check
        %p591 = pneg %p306
      $region62: #{_lambda_.2} parent=59 // pred_check_branch
        %593 = sbr.rel (%p591) target = $region64
      $region63: #{_lambda_.2} parent=59 // pred_region
        %p594 = scmp.lt.s32.totalorder %s29, 7
        %s595 = scalar_select %p594, %s29, 7
        %s596 = scalar_lea.vmem %s9, %s595
      $region64: #{_lambda_.2} parent=59 // pred_fallthru
        _
    $region60: #{_lambda_.2} parent=5 // pred_fallthru
      _
  $region6: #{_lambda_.2} parent=0 // loop_footer
    %s27 = sadd.s32 1, %s23
  $region7: #{_lambda_.2} parent=0 // loop_footer_branch
    %22 = sbr.rel target = $region3
  $region8: #{_lambda_.2} parent=0 // loop_exit
    _

</llo_original>
